<compile_context>
chip_gen: v5e
topology: v5e:2x2
jax: 0.10.0
libtpu: 0.0.40
codegen_flags: <defaults>
</compile_context>

<pallas_src>
import jax
import jax.numpy as jnp
from jax.experimental import pallas as pl
from jax.experimental.pallas import tpu as pltpu


def _round_up(x, m):
    return (x + m - 1) // m * m


def _uncertainty_kernel(x_ref, w_ref, b_ref, o_ref):
    # x_ref: (TN, D)      streamed row tile (VMEM)
    # w_ref: (8, D)       weight row replicated over 8 sublanes (VMEM, resident)
    # b_ref: (1,)         bias (SMEM)
    # o_ref: (1, 1, TN)   lane-dense row of per-input-row probabilities (VMEM)
    x = x_ref[...]
    w = w_ref[...]
    # Attention-style contraction over the shared last dim: (8, D) x (TN, D)
    # -> (8, TN).  All 8 rows are identical (w is replicated); keep row 0.
    # This puts the per-row dot products in lanes directly (no transpose).
    res = jax.lax.dot_general(
        w, x,
        dimension_numbers=(((1,), (1,)), ((), ())),
        preferred_element_type=jnp.float32,
    )
    y = res[0:1, :] + b_ref[0]                       # (1, TN)
    o_ref[...] = jax.nn.sigmoid(y).reshape(o_ref.shape).astype(o_ref.dtype)


def uncertainty_forward(x, w, b, label=None, state=None):
    """Forward pass matching Uncertainty.forward.

    x: (tlen, bs, num_nodes, dim) float32
    w: (mlp_dim, 1) float32   (transposed nn.Linear weight)
    b: (1,) float32
    returns: (bs, tlen, 1) float32
    """
    tlen, bs, num_nodes, dim = x.shape
    N = tlen * bs
    D = num_nodes * dim
    assert w.shape == (D, 1)

    # Row-major flatten, identical semantics to torch.reshape on a contiguous
    # tensor.  (astype is a no-op for f32 inputs -- no extra HBM pass.)
    x_flat = x.reshape(N, D).astype(jnp.float32)
    w_rep = jnp.broadcast_to(w.reshape(1, D).astype(jnp.float32), (8, D))
    b1 = b.reshape(1).astype(jnp.float32)

    # ---- row-tile sizing (bytes-based, no artificial row cap) ----
    # VMEM lanes are padded to 128, so budget against the padded row size;
    # 2 x-buffers (~8 MiB) + weight + output stays under every scoped default.
    row_bytes_vmem = _round_up(D, 128) * 4
    per_buf_budget = 4 * 1024 * 1024
    tn = max(8, (per_buf_budget // row_bytes_vmem) // 8 * 8)
    # Keep >= ~4 grid steps when N allows (megacore sharding on v7x, pipeline
    # overlap); never below 8 rows (sublane multiple).
    tn = min(tn, max(8, _round_up(pl.cdiv(N, 4), 8)))
    grid_n = pl.cdiv(N, tn)          # ragged last block handled by Pallas masking

    out = pl.pallas_call(
        _uncertainty_kernel,
        out_shape=jax.ShapeDtypeStruct((grid_n, 1, tn), jnp.float32),
        grid_spec=pltpu.PrefetchScalarGridSpec(
            num_scalar_prefetch=0,
            grid=(grid_n,),
            in_specs=[
                pl.BlockSpec((tn, D), lambda i: (i, 0)),             # streamed rows
                pl.BlockSpec((8, D), lambda i: (0, 0)),              # resident weight
                pl.BlockSpec(memory_space=pltpu.MemorySpace.SMEM),   # bias scalar
            ],
            out_specs=pl.BlockSpec((1, 1, tn), lambda i: (i, 0, 0)), # lane-dense rows
        ),
        compiler_params=pltpu.CompilerParams(
            dimension_semantics=("parallel",),   # independent row tiles -> megacore
        ),
    )(x_flat, w_rep, b1)

    # Tile g holds rows [g*tn, (g+1)*tn); the ragged last tile's tail (if any)
    # is garbage and is sliced off here.  view(bs, tlen, -1) exactly as PyTorch.
    return out.reshape(grid_n * tn)[:N].reshape(bs, tlen, 1)


if __name__ == "__main__":
    # Small shapes consistent with the module's forward.
    tlen, bs, num_nodes, dim = 8, 2, 4, 8
    mlp_dim = num_nodes * dim  # Linear(mlp_dim, 1)

    key = jax.random.PRNGKey(0)
    kx, kw, kb = jax.random.split(key, 3)

    x = jax.random.normal(kx, (tlen, bs, num_nodes, dim), dtype=jnp.float32)
    bound = 1.0 / (mlp_dim ** 0.5)
    w = jax.random.uniform(kw, (mlp_dim, 1), minval=-bound, maxval=bound,
                           dtype=jnp.float32)
    b = jax.random.uniform(kb, (1,), minval=-bound, maxval=bound,
                           dtype=jnp.float32)

    label = None   # unused by the module's forward
    state = None   # unused by the module's forward

    y = uncertainty_forward(x, w, b, label, state)
    jax.block_until_ready(y)

    # Reference check in plain JAX (slightly loose tolerance: summation order
    # of the MXU contraction differs from the reference matmul).
    ref = jax.nn.sigmoid(x.reshape(tlen * bs, mlp_dim) @ w + b).reshape(bs, tlen, 1)
    assert y.shape == (bs, tlen, 1)
    assert jnp.allclose(y, ref, rtol=1e-5, atol=1e-5), "mismatch vs reference"

    print("KERNEL_OK")
</pallas_src>

<mosaic_0001>
module attributes {stable_mosaic.version = 11 : i64} {
  func.func @_uncertainty_kernel(%arg0: i32, %arg1: memref<8x32xf32, #tpu.memory_space<vmem>>, %arg2: memref<8x32xf32, #tpu.memory_space<vmem>>, %arg3: memref<1xf32, #tpu.memory_space<smem>>, %arg4: memref<1x1x8xf32, #tpu.memory_space<vmem>>) attributes {dimension_semantics = [#tpu.dimension_semantics<parallel>], iteration_bounds = array<i64: 2>, scalar_prefetch = 0 : i64, scratch_operands = 0 : i64, tpu.core_type = #tpu.core_type<tc>, window_params = [{transform_indices = @transform_0, window_bounds = array<i64: 8, 32>}, {pipeline_mode = #tpu.pipeline_mode<synchronous>, transform_indices = @transform_1, window_bounds = array<i64: 8, 32>}, {transform_indices = @transform_2, window_bounds = array<i64: 1>}, {transform_indices = @transform_3, window_bounds = array<i64: 1, 1, 8>}]} {
    %c0 = arith.constant 0 : index
    %c0_0 = arith.constant 0 : index
    %0 = vector.load %arg1[%c0, %c0_0] : memref<8x32xf32, #tpu.memory_space<vmem>>, vector<8x32xf32>
    %c0_1 = arith.constant 0 : index
    %c0_2 = arith.constant 0 : index
    %1 = vector.load %arg2[%c0_1, %c0_2] : memref<8x32xf32, #tpu.memory_space<vmem>>, vector<8x32xf32>
    %cst = arith.constant dense<0.000000e+00> : vector<8x8xf32>
    %2 = tpu.matmul %1, %0, %cst {dimension_numbers = #tpu.dot_dimension_numbers<[1], [1], [0], [0], [0, 0, 1, 0], [], []>} : vector<8x32xf32>, vector<8x32xf32>, vector<8x8xf32> -> vector<8x8xf32>
    %3 = vector.extract_strided_slice %2 {offsets = [0, 0], sizes = [1, 8], strides = [1, 1]} : vector<8x8xf32> to vector<1x8xf32>
    %c0_3 = arith.constant 0 : index
    %4 = memref.load %arg3[%c0_3] : memref<1xf32, #tpu.memory_space<smem>>
    %5 = vector.broadcast %4 : f32 to vector<1x8xf32>
    %6 = arith.addf %3, %5 : vector<1x8xf32>
    %7 = arith.negf %6 : vector<1x8xf32>
    %8 = math.exp %7 : vector<1x8xf32>
    %cst_4 = arith.constant 1.000000e+00 : f32
    %9 = vector.broadcast %cst_4 : f32 to vector<1x8xf32>
    %10 = arith.addf %9, %8 : vector<1x8xf32>
    %11 = arith.divf %9, %10 : vector<1x8xf32>
    %12 = vector.shape_cast %11 : vector<1x8xf32> to vector<1x1x8xf32>
    %c0_5 = arith.constant 0 : index
    %c0_6 = arith.constant 0 : index
    %c0_7 = arith.constant 0 : index
    %13 = vector.load %arg4[%c0_5, %c0_6, %c0_7] : memref<1x1x8xf32, #tpu.memory_space<vmem>>, vector<1x1x8xf32>
    tpu.vector_store %arg4[%c0_5, %c0_6, %c0_7], %12 {strides = array<i32>} : memref<1x1x8xf32, #tpu.memory_space<vmem>>, vector<1x1x8xf32>,
    return
  }
  func.func @transform_0(%arg0: i32) -> (i32, i32) {
    %c0_i32 = arith.constant 0 : i32
    %c0_i32_0 = arith.constant 0 : i32
    return %arg0, %c0_i32 : i32, i32
  }
  func.func @transform_1(%arg0: i32) -> (i32, i32) {
    %c0_i32 = arith.constant 0 : i32
    %c0_i32_0 = arith.constant 0 : i32
    %c0_i32_1 = arith.constant 0 : i32
    return %c0_i32, %c0_i32_0 : i32, i32
  }
  func.func @transform_2(%arg0: i32) -> i32 {
    %c0_i32 = arith.constant 0 : i32
    %c0_i32_0 = arith.constant 0 : i32
    return %c0_i32 : i32
  }
  func.func @transform_3(%arg0: i32) -> (i32, i32, i32) {
    %c0_i32 = arith.constant 0 : i32
    %c0_i32_0 = arith.constant 0 : i32
    %c0_i32_1 = arith.constant 0 : i32
    return %arg0, %c0_i32, %c0_i32_0 : i32, i32, i32
  }
}

</mosaic_0001>

<llo_original>
// kernel: tpu_custom_call.1
$region0: #{tpu_custom_call.1}
  #allocation0 [shape = 'u32[]', space=smem, size = 0x4, offset = 0x4, fixed_abs, tag = 'smem constant byte address 0x4 - core index']
  #allocation1 [shape = 'u32[72,128]{1,0:T(1,128)}', space=vmem, size = 0x9000, scoped, tag = 'internal scratch']
  #allocation2 [shape = 'f32[1]{0:T(128)S(6)}', space=smem, size = 0x200, scoped, tag = 'scoped memory for tpu_custom_call.1']
  %s0 = inlined_call_operand.hbm [shape: f32[16,32], index: 0, kind: input, shape index: {}]
  %s1 = inlined_call_operand.hbm [shape: f32[8,32], index: 1, kind: input, shape index: {}]
  %s2 = inlined_call_operand.<no memory space> [shape: f32[1], index: 2, kind: input, shape index: {}]
  %s3 = inlined_call_operand.hbm [shape: f32[2,1,8], index: 3, kind: output, shape index: {}]
  %s4 = sld [smem:[#allocation0]]
  $region53: #{tpu_custom_call.1} parent=0
    _
  %s6 = ssub.s32 1, %s4
  %s7 = scalar_select 0, %s6, %s4
  %8 = sst [smem:[#allocation2]] %s2
  $region1: #{tpu_custom_call.1} parent=0
    #allocation3 [shape = 'u8[8192]{0}', space=vmem, size = 0x2000, scoped, tag = 'input window, operand 0']
    #allocation4 [shape = 's32[2]{0}', space=sflag, size = 0x8, scoped, tag = 'scoped memory for tpu_custom_call.1']
    #allocation5 [shape = 's32[2]{0}', space=sflag, size = 0x8, scoped, tag = 'scoped memory for tpu_custom_call.1']
    #allocation6 [shape = 'u8[4096]{0}', space=vmem, size = 0x1000, scoped, tag = 'input window, operand 1, single buffered']
    #allocation7 [shape = 's32[1]{0}', space=sflag, size = 0x4, scoped, tag = 'scoped memory for tpu_custom_call.1']
    #allocation8 [shape = 'u8[1024]{0}', space=vmem, size = 0x400, scoped, tag = 'output window, operand 0']
    %9 = vsyncpa [#allocation4], 0
    %s10 = scalar_lea.sflag [#allocation4], 1
    %11 = vsyncpa %s10, 0
    %12 = vsyncpa [#allocation7], 0
    %13 = vsyncpa [#allocation5], 0
    %s14 = scalar_lea.sflag [#allocation5], 1
    %15 = vsyncpa %s14, 0
    loop: start=0, step=1, limit=4
    $region2: #{tpu_custom_call.1} parent=1 // loop_pre_header
      _
    $region3: #{tpu_custom_call.1} parent=1 // loop_header
      %s17 = sphi 0, %s21
      %p18 = scmp.ge.s32.totalorder %s17, 4
      %s27 = sphi 0, %s29
      %s30 = sphi 0, %s27
      %s31 = sphi 0, %s30
      %s47 = sphi 0, %s31
      %s51 = sphi 0, %s51
      %s53 = sphi 0, %s51
      %s54 = sphi 0, %s53
      %s68 = sphi 0, %s54
      %s72 = sphi 0, %s72
      %s74 = sphi 0, %s72
      %s75 = sphi 0, %s74
      %s89 = sphi 0, %s75
      %s95 = sphi 0, %s97
      %s98 = sphi 0, %s95
      %s99 = sphi 0, %s98
      %s115 = sphi 0, %s99
    $region4: #{tpu_custom_call.1} parent=1 // loop_header_branch
      %20 = sbr.rel (%p18) target = $region8
    $region5: #{tpu_custom_call.1} parent=1 // loop_body
      %s22 = ssub.s32 %s17, 1
      %s23 = ssub.s32 %s17, 2
      %s24 = sadd.s32 %s17, 1
      %s25 = ssub.s32 %s17, %s24
      %p26 = scmp.eq.s32.totalorder %s25, 0
      %s28 = sadd.s32 %s27, 1
      %s29 = scalar_select %p26, %s27, %s28
      %p32 = pneg %p26
      %p33 = scmp.eq.s32.totalorder %s17, 1
      %p34 = por %p32, %p33
      %p35 = scmp.ne.s32.totalorder %s27, %s30
      %p36 = scmp.eq.s32.totalorder %s17, 0
      %p37 = por %p35, %p36
      %p38 = scmp.ne.s32.totalorder %s27, %s30
      %p39 = scmp.eq.s32.totalorder %s22, 1
      %p40 = por %p38, %p39
      %p41 = scmp.ne.s32.totalorder %s30, %s31
      %p42 = scmp.eq.s32.totalorder %s22, 0
      %p43 = por %p41, %p42
      %p44 = scmp.ne.s32.totalorder %s30, %s31
      %p45 = scmp.eq.s32.totalorder %s23, 1
      %p46 = por %p44, %p45
      %p48 = scmp.ne.s32.totalorder %s31, %s47
      %p49 = scmp.eq.s32.totalorder %s23, 0
      %p50 = por %p48, %p49
      %s52 = sadd.s32 %s51, 1
      %p55 = scmp.eq.s32.totalorder %s17, 1
      %p56 = scmp.ne.s32.totalorder %s51, %s53
      %p57 = scmp.eq.s32.totalorder %s17, 0
      %p58 = por %p56, %p57
      %p59 = scmp.ne.s32.totalorder %s51, %s53
      %p60 = scmp.eq.s32.totalorder %s22, 1
      %p61 = por %p59, %p60
      %p62 = scmp.ne.s32.totalorder %s53, %s54
      %p63 = scmp.eq.s32.totalorder %s22, 0
      %p64 = por %p62, %p63
      %p65 = scmp.ne.s32.totalorder %s53, %s54
      %p66 = scmp.eq.s32.totalorder %s23, 1
      %p67 = por %p65, %p66
      %p69 = scmp.ne.s32.totalorder %s54, %s68
      %p70 = scmp.eq.s32.totalorder %s23, 0
      %p71 = por %p69, %p70
      %s73 = sadd.s32 %s72, 1
      %p76 = scmp.eq.s32.totalorder %s17, 1
      %p77 = scmp.ne.s32.totalorder %s72, %s74
      %p78 = scmp.eq.s32.totalorder %s17, 0
      %p79 = por %p77, %p78
      %p80 = scmp.ne.s32.totalorder %s72, %s74
      %p81 = scmp.eq.s32.totalorder %s22, 1
      %p82 = por %p80, %p81
      %p83 = scmp.ne.s32.totalorder %s74, %s75
      %p84 = scmp.eq.s32.totalorder %s22, 0
      %p85 = por %p83, %p84
      %p86 = scmp.ne.s32.totalorder %s74, %s75
      %p87 = scmp.eq.s32.totalorder %s23, 1
      %p88 = por %p86, %p87
      %p90 = scmp.ne.s32.totalorder %s75, %s89
      %p91 = scmp.eq.s32.totalorder %s23, 0
      %p92 = por %p90, %p91
      %s93 = ssub.s32 %s17, %s24
      %p94 = scmp.eq.s32.totalorder %s93, 0
      %s96 = sadd.s32 %s95, 1
      %s97 = scalar_select %p94, %s95, %s96
      %p100 = pneg %p94
      %p101 = scmp.eq.s32.totalorder %s17, 1
      %p102 = por %p100, %p101
      %p103 = scmp.ne.s32.totalorder %s95, %s98
      %p104 = scmp.eq.s32.totalorder %s17, 0
      %p105 = por %p103, %p104
      %p106 = scmp.ne.s32.totalorder %s95, %s98
      %p107 = scmp.eq.s32.totalorder %s22, 1
      %p108 = por %p106, %p107
      %p109 = scmp.ne.s32.totalorder %s98, %s99
      %p110 = scmp.eq.s32.totalorder %s22, 0
      %p111 = por %p109, %p110
      %p112 = scmp.ne.s32.totalorder %s98, %s99
      %p113 = scmp.eq.s32.totalorder %s23, 1
      %p114 = por %p112, %p113
      %p116 = scmp.ne.s32.totalorder %s99, %s115
      %p117 = scmp.eq.s32.totalorder %s23, 0
      %p118 = por %p116, %p117
      %p119 = scmp.le.s32.totalorder 1, %s17
      %p120 = scmp.lt.s32.totalorder %s17, 3
      %p121 = pnand %p119, %p120
      %p122 = pneg %p121
      // Predicated region
      $region9: #{tpu_custom_call.1} parent=5 // pred_check
        _
      $region10: #{tpu_custom_call.1} parent=5 // pred_check_branch
        %124 = sbr.rel (%p121) target = $region12
      $region11: #{tpu_custom_call.1} parent=5 // pred_region
        %s125 = ssub.s32 %s17, 1
        // Predicated region
        $region13: #{tpu_custom_call.1} parent=11 // pred_check
          %p126 = pneg %p64
        $region14: #{tpu_custom_call.1} parent=11 // pred_check_branch
          %128 = sbr.rel (%p126) target = $region16
        $region15: #{tpu_custom_call.1} parent=11 // pred_region
          %130 = vsyncadd [#allocation7], 0
          %s132 = sshll.u32 %s1, 4
          %s133 = int_to_ptr.hbm [resolvable:$true] %s132
          %s134 = sshll.u32 [#allocation6], 4
          %s135 = int_to_ptr.vmem [resolvable:$true] %s134
          %137 = dma.hbm_to_vmem [thread:$0]  %s133, 128, %s135, [#allocation7]
        $region16: #{tpu_custom_call.1} parent=11 // pred_fallthru
          _
        // Predicated region
        $region17: #{tpu_custom_call.1} parent=11 // pred_check
          %p138 = pneg %p85
        $region18: #{tpu_custom_call.1} parent=11 // pred_check_branch
          %140 = sbr.rel (%p138) target = $region20
        $region19: #{tpu_custom_call.1} parent=11 // pred_region
          _
        $region20: #{tpu_custom_call.1} parent=11 // pred_fallthru
          _
      $region12: #{tpu_custom_call.1} parent=5 // pred_fallthru
        _
      %p141 = scmp.lt.s32.totalorder %s17, 2
      // Predicated region
      $region21: #{tpu_custom_call.1} parent=5 // pred_check
        %p142 = pneg %p141
      $region22: #{tpu_custom_call.1} parent=5 // pred_check_branch
        %144 = sbr.rel (%p142) target = $region24
      $region23: #{tpu_custom_call.1} parent=5 // pred_region
        // Predicated region
        $region25: #{tpu_custom_call.1} parent=23 // pred_check
          %p145 = pneg %p37
        $region26: #{tpu_custom_call.1} parent=23 // pred_check_branch
          %147 = sbr.rel (%p145) target = $region28
        $region27: #{tpu_custom_call.1} parent=23 // pred_region
          %s148 = sand.u32 %s27, 1
          %s149 = scalar_lea.sflag [#allocation4], %s148
          %s150 = sand.u32 %s27, 1
          %s151 = smul.addr %s150, 8
          %s152 = scalar_lea.vmem [#allocation3], %s151
          %154 = vsyncadd %s149, 0
          %s155 = smul.addr %s17, 8
          %s156 = scalar_lea.hbm %s0, %s155
          %s158 = sshll.u32 %s156, 4
          %s159 = int_to_ptr.hbm [resolvable:$true] %s158
          %s160 = sshll.u32 %s152, 4
          %s161 = int_to_ptr.vmem [resolvable:$true] %s160
          %163 = dma.hbm_to_vmem [thread:$0]  %s159, 128, %s161, %s149
        $region28: #{tpu_custom_call.1} parent=23 // pred_fallthru
          _
      $region24: #{tpu_custom_call.1} parent=5 // pred_fallthru
        _
      %p164 = scmp.le.s32.totalorder 1, %s17
      %p165 = scmp.lt.s32.totalorder %s17, 3
      %p166 = pnand %p164, %p165
      %p167 = pneg %p166
      // Predicated region
      $region29: #{tpu_custom_call.1} parent=5 // pred_check
        _
      $region30: #{tpu_custom_call.1} parent=5 // pred_check_branch
        %169 = sbr.rel (%p166) target = $region32
      $region31: #{tpu_custom_call.1} parent=5 // pred_region
        %s170 = ssub.s32 %s17, 1
        %s171 = sand.u32 %s30, 1
        %s172 = scalar_lea.sflag [#allocation4], %s171
        %s173 = sand.u32 %s30, 1
        %s174 = smul.addr %s173, 8
        %s175 = scalar_lea.vmem [#allocation3], %s174
        // Predicated region
        $region33: #{tpu_custom_call.1} parent=31 // pred_check
          %p176 = pneg %p43
        $region34: #{tpu_custom_call.1} parent=31 // pred_check_branch
          %178 = sbr.rel (%p176) target = $region36
        $region35: #{tpu_custom_call.1} parent=31 // pred_region
          %180 = dma.done %s172, 128
        $region36: #{tpu_custom_call.1} parent=31 // pred_fallthru
          _
        // Predicated region
        $region37: #{tpu_custom_call.1} parent=31 // pred_check
          %p181 = pneg %p64
        $region38: #{tpu_custom_call.1} parent=31 // pred_check_branch
          %183 = sbr.rel (%p181) target = $region40
        $region39: #{tpu_custom_call.1} parent=31 // pred_region
          %185 = dma.done [#allocation7], 128
        $region40: #{tpu_custom_call.1} parent=31 // pred_fallthru
          _
        %s186 = sand.u32 %s30, 1
        %s187 = scalar_lea.sflag [#allocation4], %s186
        %s188 = sand.u32 %s30, 1
        %s189 = smul.addr %s188, 8
        %s190 = scalar_lea.vmem [#allocation3], %s189
        %p191 = pneg %p43
        %p192 = pneg %p40
        %p193 = pneg %p64
        %p194 = pneg %p61
        %p195 = pneg %p85
        %p196 = pneg %p82
        %p197 = pneg %p111
        %p198 = pneg %p108
        %s199 = sand.u32 %s98, 1
        %s200 = scalar_lea.sflag [#allocation5], %s199
        %s201 = sand.u32 %s98, 1
        %s202 = scalar_lea.vmem [#allocation8], %s201
        %v203 = vld [vmem:[%s175] sm:$0xff]
        %v204 = vld [vmem:[#allocation6] sm:$0xff]
        %vm205 = vcmask 261120
        %v207 = vsel %vm205, %v204, 0
        %v210 = vsel %vm205, %v203, 0
        %212 = vmatpush.xpose.msra.mxu0 0.0
        %213 = vmatpush.xpose.msra.mxu0 0.0
        %214 = vmatpush.xpose.msra.mxu0 0.0
        %215 = vmatpush.xpose.msra.mxu0 0.0
        %216 = vmatpush.xpose.msra.mxu0 0.0
        %217 = vmatpush.xpose.msra.mxu0 0.0
        %218 = vmatpush.xpose.msra.mxu0 0.0
        %219 = vmatpush.xpose.msra.mxu0 0.0
        %220 = vmatpush.xpose.msra.mxu0 0.0
        %221 = vmatpush.xpose.msra.mxu0 0.0
        %222 = vmatpush.xpose.msra.mxu0 0.0
        %223 = vmatpush.xpose.msra.mxu0 0.0
        %224 = vmatpush.xpose.msra.mxu0 0.0
        %225 = vmatpush.xpose.msra.mxu0 0.0
        %226 = vmatpush.xpose.msra.mxu0 0.0
        %227 = vmatpush.xpose.msra.mxu0 %v210
        %228 = vmatmul.f32.gmra.mxu0 %v207
        %v229 = vpop.f32.mrf.mxu0
        %v230 = vadd.f32 0.0, %v229
        %231 = vdwg.mxu0
        %s232 = sld [smem:[#allocation2]]
        %v233 = vstv %s232
        %v234 = vadd.f32 %v230, %v233
        %v235 = vxor.u32 %v234, 2147483648
        %v236 = vmul.f32 %v235, 1.442695
        %v237 = vpow.pop %v236
        %v238 = vadd.f32 %v237, 1.0
        %v239 = vrcp.pop %v238
        %v240 = vmul.f32 %v238, %v239
        %v241 = vsub.f32 1.0, %v240
        %v242 = vmul.f32 %v239, %v241
        %v243 = vadd.f32 %v239, %v242
        %vm244 = vweird.f32 %v238
        %vm245 = vweird.f32 %v239
        %vm246 = vmor %vm244, %vm245
        %v247 = vsel %vm246, %v239, %v243
        %v248 = vand.u32 2147483647, %v238
        %vm249 = vcmp.eq.f32.partialorder %v248, 8.507059e+37
        %v250 = vand.u32 %v238, 2147483648
        %v251 = vor.u32 1.1754944e-38, %v250
        %v252 = vsel %vm249, %v251, %v247
        %v253 = vmul.f32 1.0, %v252
        %vm254 = vcmask 57344
        %255 = vst.msk [vmem:[%s202] sm:$0x1] %vm254, %v253
        %s256 = sand.u32 %s98, 1
        %s257 = scalar_lea.sflag [#allocation5], %s256
        %s258 = sand.u32 %s98, 1
        %s259 = scalar_lea.vmem [#allocation8], %s258
        // Predicated region
        $region41: #{tpu_custom_call.1} parent=31 // pred_check
          %p260 = pneg %p108
        $region42: #{tpu_custom_call.1} parent=31 // pred_check_branch
          %262 = sbr.rel (%p260) target = $region44
        $region43: #{tpu_custom_call.1} parent=31 // pred_region
          %264 = vsyncadd %s257, 0
          %s265 = scalar_lea.hbm %s3, %s22
          %s267 = sshll.u32 %s259, 4
          %s268 = int_to_ptr.vmem [resolvable:$true] %s267
          %s269 = sshll.u32 %s265, 4
          %s270 = int_to_ptr.hbm [resolvable:$true] %s269
          %272 = dma.vmem_to_hbm [thread:$0]  %s268, 16, %s270, %s257
        $region44: #{tpu_custom_call.1} parent=31 // pred_fallthru
          _
      $region32: #{tpu_custom_call.1} parent=5 // pred_fallthru
        _
      %p273 = scmp.le.s32.totalorder 2, %s17
      // Predicated region
      $region45: #{tpu_custom_call.1} parent=5 // pred_check
        %p274 = pneg %p273
      $region46: #{tpu_custom_call.1} parent=5 // pred_check_branch
        %276 = sbr.rel (%p274) target = $region48
      $region47: #{tpu_custom_call.1} parent=5 // pred_region
        %s277 = ssub.s32 %s17, 2
        // Predicated region
        $region49: #{tpu_custom_call.1} parent=47 // pred_check
          %p278 = pneg %p114
        $region50: #{tpu_custom_call.1} parent=47 // pred_check_branch
          %280 = sbr.rel (%p278) target = $region52
        $region51: #{tpu_custom_call.1} parent=47 // pred_region
          %s281 = sand.u32 %s99, 1
          %s282 = scalar_lea.sflag [#allocation5], %s281
          %s283 = sand.u32 %s99, 1
          %s284 = scalar_lea.vmem [#allocation8], %s283
          %286 = dma.done %s282, 16
        $region52: #{tpu_custom_call.1} parent=47 // pred_fallthru
          _
      $region48: #{tpu_custom_call.1} parent=5 // pred_fallthru
        _
    $region6: #{tpu_custom_call.1} parent=1 // loop_footer
      %s21 = sadd.s32 1, %s17
    $region7: #{tpu_custom_call.1} parent=1 // loop_footer_branch
      %16 = sbr.rel target = $region3
    $region8: #{tpu_custom_call.1} parent=1 // loop_exit
      _
    %287 = vsyncpa [#allocation4], 1
    %s288 = scalar_lea.sflag [#allocation4], 1
    %289 = vsyncpa %s288, 1
    %290 = vsyncpa [#allocation7], 1
    %291 = vsyncpa [#allocation5], 1
    %s292 = scalar_lea.sflag [#allocation5], 1
    %293 = vsyncpa %s292, 1

</llo_original>
